<compile_context>
chip_gen: v5e
topology: v5e:2x2
jax: 0.10.0
libtpu: 0.0.40
codegen_flags: <defaults>
</compile_context>

<pallas_src>
import functools

import jax
import jax.numpy as jnp
from jax import lax
from jax.experimental import pallas as pl
from jax.experimental.pallas import tpu as pltpu

LANE = 128


def _mse_partial_kernel(pred_ref, true_ref, acc_ref, *, rows_valid, tile_rows,
                        chunks_per_core, need_mask):
    i = pl.program_id(1)  # reduction ("arbitrary") axis

    @pl.when(i == 0)
    def _():
        acc_ref[...] = jnp.zeros_like(acc_ref)

    diff = pred_ref[...].astype(jnp.float32) - true_ref[...].astype(jnp.float32)
    sq = diff * diff

    if need_mask:
        # Zero rows that fall past the end of the (rows_valid, 128) slab:
        # covers both the ragged last block and duplicated (clamped) blocks
        # on an over-covering core.
        c = pl.program_id(0)
        global_chunk = c * chunks_per_core + i
        row_ids = global_chunk * tile_rows + lax.broadcasted_iota(
            jnp.int32, sq.shape, 0)
        sq = jnp.where(row_ids < rows_valid, sq, 0.0)

    acc_ref[...] += sq


def mse_loss(y_pred, y_true, *, tile_rows=4096, num_cores=2):
    """mean((y_pred - y_true)**2) via a Pallas TPU kernel. Returns f32 scalar."""
    assert y_pred.shape == y_true.shape, "shape mismatch"
    n_elems = y_pred.size
    assert n_elems > 0

    itemsize = jnp.dtype(y_pred.dtype).itemsize
    sub = max(8, 32 // itemsize)  # sublane packing: 8 f32, 16 bf16, 32 int8

    pred_flat = jnp.ravel(y_pred)
    true_flat = jnp.ravel(y_true)

    # Pad only when strictly needed for the lane-dense reshape (n % 128 != 0).
    # Padded elements are identical zeros in both inputs -> contribute 0.
    pad = (-n_elems) % LANE
    if pad:
        pred_flat = jnp.pad(pred_flat, (0, pad))
        true_flat = jnp.pad(true_flat, (0, pad))

    rows = pred_flat.size // LANE
    pred2d = pred_flat.reshape(rows, LANE)
    true2d = true_flat.reshape(rows, LANE)

    # Tile rows: multiple of the sublane packing, clamped to the data size.
    tile_rows = max(sub, (tile_rows // sub) * sub)
    rows_rounded = ((rows + sub - 1) // sub) * sub
    tile_rows = min(tile_rows, rows_rounded)

    chunks = (rows + tile_rows - 1) // tile_rows      # total row-blocks
    num_cores = max(1, min(num_cores, chunks))        # don't over-split
    cpc = (chunks + num_cores - 1) // num_cores       # chunks per core

    # Masking needed if the last block is ragged or a core over-covers.
    need_mask = (rows % tile_rows != 0) or (num_cores * cpc != chunks)

    def in_index_map(c, i):
        # Clamp so duplicated trailing grid points on the over-covering core
        # re-read a valid block (their contribution is masked to zero).
        return (jnp.minimum(c * cpc + i, chunks - 1), 0)

    kernel = functools.partial(
        _mse_partial_kernel,
        rows_valid=rows,
        tile_rows=tile_rows,
        chunks_per_core=cpc,
        need_mask=need_mask,
    )

    partial = pl.pallas_call(
        kernel,
        out_shape=jax.ShapeDtypeStruct((num_cores * tile_rows, LANE),
                                       jnp.float32),
        grid_spec=pltpu.PrefetchScalarGridSpec(
            num_scalar_prefetch=0,
            grid=(num_cores, cpc),
            in_specs=[
                pl.BlockSpec((tile_rows, LANE), in_index_map),
                pl.BlockSpec((tile_rows, LANE), in_index_map),
            ],
            out_specs=pl.BlockSpec((tile_rows, LANE), lambda c, i: (c, 0)),
        ),
        compiler_params=pltpu.CompilerParams(
            dimension_semantics=("parallel", "arbitrary"),
        ),
    )(pred2d, true2d)

    # Tiny lane-dense final reduce + normalization in XLA.
    return jnp.sum(partial) / jnp.float32(n_elems)


if __name__ == "__main__":
    root = jax.random.PRNGKey(0)

    def check(k, shape, **kw):
        k1, k2 = jax.random.split(k)
        y_pred = jax.random.normal(k1, shape, dtype=jnp.float32)
        y_true = jax.random.normal(k2, shape, dtype=jnp.float32)
        loss = jax.block_until_ready(mse_loss(y_pred, y_true, **kw))
        ref = jnp.mean((y_pred - y_true) ** 2)
        assert jnp.allclose(loss, ref, rtol=1e-5, atol=1e-6), (shape, loss, ref)

    keys = jax.random.split(root, 4)
    # Primary case matching the module's typical NCHW usage.
    check(keys[0], (2, 4, 16, 16))
    # Ragged / padded case (n % 128 != 0): exercises in-kernel row masking.
    check(keys[1], (3, 5, 7, 11))
    # Multi-chunk, 2-core split, even coverage.
    check(keys[2], (2, 4, 64, 64), tile_rows=64)
    # Multi-chunk with clamped duplicate blocks on the second core.
    check(keys[3], (2, 4, 64, 64), tile_rows=96)

    print("KERNEL_OK")
</pallas_src>

<mosaic_0001>
module attributes {stable_mosaic.version = 11 : i64} {
  func.func @_mse_partial_kernel(%arg0: i32, %arg1: i32, %arg2: memref<16x128xf32, #tpu.memory_space<vmem>>, %arg3: memref<16x128xf32, #tpu.memory_space<vmem>>, %arg4: memref<16x128xf32, #tpu.memory_space<vmem>>) attributes {dimension_semantics = [#tpu.dimension_semantics<parallel>, #tpu.dimension_semantics<arbitrary>], iteration_bounds = array<i64: 1, 1>, scalar_prefetch = 0 : i64, scratch_operands = 0 : i64, tpu.core_type = #tpu.core_type<tc>, window_params = [{transform_indices = @transform_0, window_bounds = array<i64: 16, 128>}, {transform_indices = @transform_1, window_bounds = array<i64: 16, 128>}, {transform_indices = @transform_2, window_bounds = array<i64: 16, 128>}]} {
    %c0_i32 = arith.constant 0 : i32
    %0 = arith.cmpi eq, %arg1, %c0_i32 : i32
    %1 = arith.extui %0 : i1 to i32
    %c0_i32_0 = arith.constant 0 : i32
    %2 = arith.cmpi ne, %1, %c0_i32_0 : i32
    scf.if %2 {
      %cst = arith.constant 0.000000e+00 : f32
      %10 = vector.broadcast %cst : f32 to vector<16x128xf32>
      %c0_8 = arith.constant 0 : index
      %c0_9 = arith.constant 0 : index
      %11 = vector.load %arg4[%c0_8, %c0_9] : memref<16x128xf32, #tpu.memory_space<vmem>>, vector<16x128xf32>
      tpu.vector_store %arg4[%c0_8, %c0_9], %10 {strides = array<i32>} : memref<16x128xf32, #tpu.memory_space<vmem>>, vector<16x128xf32>,
    } else {
    }
    %c0 = arith.constant 0 : index
    %c0_1 = arith.constant 0 : index
    %3 = vector.load %arg2[%c0, %c0_1] : memref<16x128xf32, #tpu.memory_space<vmem>>, vector<16x128xf32>
    %c0_2 = arith.constant 0 : index
    %c0_3 = arith.constant 0 : index
    %4 = vector.load %arg3[%c0_2, %c0_3] : memref<16x128xf32, #tpu.memory_space<vmem>>, vector<16x128xf32>
    %5 = arith.subf %3, %4 : vector<16x128xf32>
    %6 = arith.mulf %5, %5 : vector<16x128xf32>
    %c0_4 = arith.constant 0 : index
    %c0_5 = arith.constant 0 : index
    %7 = vector.load %arg4[%c0_4, %c0_5] : memref<16x128xf32, #tpu.memory_space<vmem>>, vector<16x128xf32>
    %8 = arith.addf %7, %6 : vector<16x128xf32>
    %c0_6 = arith.constant 0 : index
    %c0_7 = arith.constant 0 : index
    %9 = vector.load %arg4[%c0_6, %c0_7] : memref<16x128xf32, #tpu.memory_space<vmem>>, vector<16x128xf32>
    tpu.vector_store %arg4[%c0_6, %c0_7], %8 {strides = array<i32>} : memref<16x128xf32, #tpu.memory_space<vmem>>, vector<16x128xf32>,
    return
  }
  func.func @transform_0(%arg0: i32, %arg1: i32) -> (i32, i32) {
    %c1_i32 = arith.constant 1 : i32
    %0 = arith.muli %arg0, %c1_i32 : i32
    %1 = arith.addi %0, %arg1 : i32
    %c0_i32 = arith.constant 0 : i32
    %2 = arith.minsi %1, %c0_i32 : i32
    %c0_i32_0 = arith.constant 0 : i32
    %c0_i32_1 = arith.constant 0 : i32
    return %2, %c0_i32_0 : i32, i32
  }
  func.func @transform_1(%arg0: i32, %arg1: i32) -> (i32, i32) {
    %c1_i32 = arith.constant 1 : i32
    %0 = arith.muli %arg0, %c1_i32 : i32
    %1 = arith.addi %0, %arg1 : i32
    %c0_i32 = arith.constant 0 : i32
    %2 = arith.minsi %1, %c0_i32 : i32
    %c0_i32_0 = arith.constant 0 : i32
    %c0_i32_1 = arith.constant 0 : i32
    return %2, %c0_i32_0 : i32, i32
  }
  func.func @transform_2(%arg0: i32, %arg1: i32) -> (i32, i32) {
    %c0_i32 = arith.constant 0 : i32
    %c0_i32_0 = arith.constant 0 : i32
    return %arg0, %c0_i32 : i32, i32
  }
}

</mosaic_0001>

<llo_original>
// kernel: tpu_custom_call.1
$region0: #{tpu_custom_call.1}
  #allocation0 [shape = 'u32[]', space=smem, size = 0x4, offset = 0x4, fixed_abs, tag = 'smem constant byte address 0x4 - core index']
  #allocation1 [shape = 'u32[72,128]{1,0:T(1,128)}', space=vmem, size = 0x9000, scoped, tag = 'internal scratch']
  %s0 = inlined_call_operand.hbm [shape: f32[16,128], index: 0, kind: input, shape index: {}]
  %s1 = inlined_call_operand.hbm [shape: f32[16,128], index: 1, kind: input, shape index: {}]
  %s2 = inlined_call_operand.hbm [shape: f32[16,128], index: 2, kind: output, shape index: {}]
  %s3 = sld [smem:[#allocation0]]
  $region30: #{tpu_custom_call.1} parent=0
    _
  %s5 = ssub.s32 1, %s3
  %s6 = scalar_select 0, %s5, %s3
  $region1: #{tpu_custom_call.1} parent=0
    #allocation2 [shape = 'u8[8192]{0}', space=vmem, size = 0x2000, scoped, tag = 'input window, operand 0, single buffered']
    #allocation3 [shape = 's32[1]{0}', space=sflag, size = 0x4, scoped, tag = 'scoped memory for tpu_custom_call.1']
    #allocation4 [shape = 's32[1]{0}', space=sflag, size = 0x4, scoped, tag = 'scoped memory for tpu_custom_call.1']
    #allocation5 [shape = 'u8[8192]{0}', space=vmem, size = 0x2000, scoped, tag = 'input window, operand 1, single buffered']
    #allocation6 [shape = 's32[1]{0}', space=sflag, size = 0x4, scoped, tag = 'scoped memory for tpu_custom_call.1']
    #allocation7 [shape = 'u8[8192]{0}', space=vmem, size = 0x2000, scoped, tag = 'output window, operand 0, single buffered']
    %7 = vsyncpa [#allocation3], 0
    %8 = vsyncpa [#allocation6], 0
    %9 = vsyncpa [#allocation4], 0
    // Predicated region
    $region2: #{tpu_custom_call.1} parent=1 // pred_check
      _
    $region3: #{tpu_custom_call.1} parent=1 // pred_check_branch
      %11 = sbr.rel (0) target = $region5
    $region4: #{tpu_custom_call.1} parent=1 // pred_region
      %s12 = sadd.s32 0, 0
      %p13 = scmp.lt.s32.totalorder %s12, 0
      %s14 = scalar_select %p13, %s12, 0
      %s15 = smul.u32 2, %s14
      %17 = vsyncadd [#allocation3], 0
      %s18 = smul.addr %s15, 8
      %s19 = scalar_lea.hbm %s0, %s18
      %s20 = sshll.u32 %s19, 4
      %s21 = int_to_ptr.hbm [resolvable:$true] %s20
      %s22 = sshll.u32 [#allocation2], 4
      %s23 = int_to_ptr.vmem [resolvable:$true] %s22
      %28 = dma.hbm_to_vmem [thread:$0]  %s21, 256, %s23, [#allocation3], 128, 128, 8
    $region5: #{tpu_custom_call.1} parent=1 // pred_fallthru
      _
    // Predicated region
    $region6: #{tpu_custom_call.1} parent=1 // pred_check
      _
    $region7: #{tpu_custom_call.1} parent=1 // pred_check_branch
      %30 = sbr.rel (0) target = $region9
    $region8: #{tpu_custom_call.1} parent=1 // pred_region
      %s31 = sadd.s32 0, 0
      %p32 = scmp.lt.s32.totalorder %s31, 0
      %s33 = scalar_select %p32, %s31, 0
      %s34 = smul.u32 2, %s33
      %36 = vsyncadd [#allocation6], 0
      %s37 = smul.addr %s34, 8
      %s38 = scalar_lea.hbm %s1, %s37
      %s39 = sshll.u32 %s38, 4
      %s40 = int_to_ptr.hbm [resolvable:$true] %s39
      %s41 = sshll.u32 [#allocation5], 4
      %s42 = int_to_ptr.vmem [resolvable:$true] %s41
      %47 = dma.hbm_to_vmem [thread:$0]  %s40, 256, %s42, [#allocation6], 128, 128, 8
    $region9: #{tpu_custom_call.1} parent=1 // pred_fallthru
      _
    // Predicated region
    $region10: #{tpu_custom_call.1} parent=1 // pred_check
      _
    $region11: #{tpu_custom_call.1} parent=1 // pred_check_branch
      %49 = sbr.rel (0) target = $region13
    $region12: #{tpu_custom_call.1} parent=1 // pred_region
      %51 = dma.done [#allocation3], 256
    $region13: #{tpu_custom_call.1} parent=1 // pred_fallthru
      _
    // Predicated region
    $region14: #{tpu_custom_call.1} parent=1 // pred_check
      _
    $region15: #{tpu_custom_call.1} parent=1 // pred_check_branch
      %53 = sbr.rel (0) target = $region17
    $region16: #{tpu_custom_call.1} parent=1 // pred_region
      %55 = dma.done [#allocation6], 256
    $region17: #{tpu_custom_call.1} parent=1 // pred_fallthru
      _
    %s56 = sadd.s32 0, 0
    %p57 = scmp.lt.s32.totalorder %s56, 0
    %s58 = scalar_select %p57, %s56, 0
    %s59 = smul.u32 2, %s58
    %s60 = sadd.s32 0, 0
    %p61 = scmp.lt.s32.totalorder %s60, 0
    %s62 = scalar_select %p61, %s60, 0
    %s63 = smul.u32 2, %s62
    %p64 = scmp.eq.s32.totalorder 0, 0
    // Predicated region
    $region18: #{tpu_custom_call.1} parent=1 // pred_check
      %p65 = pneg %p64
    $region19: #{tpu_custom_call.1} parent=1 // pred_check_branch
      %67 = sbr.rel (%p65) target = $region21
    $region20: #{tpu_custom_call.1} parent=1 // pred_region
      %68 = vst [vmem:[#allocation7] sm:$0xff] 0.0
      %69 = vst [vmem:[#allocation7 + $0x8] sm:$0xff] 0.0
    $region21: #{tpu_custom_call.1} parent=1 // pred_fallthru
      _
    %v70 = vld [vmem:[#allocation2] sm:$0xff]
    %v71 = vld [vmem:[#allocation2 + $0x8] sm:$0xff]
    %v72 = vld [vmem:[#allocation5] sm:$0xff]
    %v73 = vld [vmem:[#allocation5 + $0x8] sm:$0xff]
    %v74 = vsub.f32 %v70, %v72
    %v75 = vsub.f32 %v71, %v73
    %v76 = vmul.f32 %v74, %v74
    %v77 = vmul.f32 %v75, %v75
    %v78 = vld [vmem:[#allocation7] sm:$0xff]
    %v79 = vld [vmem:[#allocation7 + $0x8] sm:$0xff]
    %v80 = vadd.f32 %v78, %v76
    %v81 = vadd.f32 %v79, %v77
    %82 = vst [vmem:[#allocation7] sm:$0xff] %v80
    %83 = vst [vmem:[#allocation7 + $0x8] sm:$0xff] %v81
    // Predicated region
    $region22: #{tpu_custom_call.1} parent=1 // pred_check
      _
    $region23: #{tpu_custom_call.1} parent=1 // pred_check_branch
      %85 = sbr.rel (0) target = $region25
    $region24: #{tpu_custom_call.1} parent=1 // pred_region
      %87 = vsyncadd [#allocation4], 0
      %s88 = sshll.u32 [#allocation7], 4
      %s89 = int_to_ptr.vmem [resolvable:$true] %s88
      %s90 = sshll.u32 %s2, 4
      %s91 = int_to_ptr.hbm [resolvable:$true] %s90
      %96 = dma.vmem_to_hbm [thread:$0]  %s89, 256, %s91, [#allocation4], 128, 128, 8
    $region25: #{tpu_custom_call.1} parent=1 // pred_fallthru
      _
    // Predicated region
    $region26: #{tpu_custom_call.1} parent=1 // pred_check
      _
    $region27: #{tpu_custom_call.1} parent=1 // pred_check_branch
      %98 = sbr.rel (0) target = $region29
    $region28: #{tpu_custom_call.1} parent=1 // pred_region
      %100 = dma.done [#allocation4], 256
    $region29: #{tpu_custom_call.1} parent=1 // pred_fallthru
      _
    %101 = vsyncpa [#allocation3], 1
    %102 = vsyncpa [#allocation6], 1
    %103 = vsyncpa [#allocation4], 1

</llo_original>
